<compile_context>
chip_gen: v7x
topology: tpu7x:2x2x1
jax: 0.10.0
libtpu: 0.0.40
codegen_flags: <defaults>
</compile_context>

<pallas_src>
import numpy as np

import jax
import jax.numpy as jnp
from jax.experimental import pallas as pl
from jax.experimental.pallas import tpu as pltpu


_FPAD = 128  # lane-dense padded feature dim (one full lane width / one v5e MXU pass)


def _pooling_matrix(H, W, M, dtype):
    """Constant (H*W, _FPAD) matrix whose columns are the 1x1/2x2/4x4 averaging weights.

    Built in f32, then cast to the input dtype so the MXU runs in native (e.g. bf16) mode.
    Note: 1/(pool_area) is exact in bf16 when the pooled area is a power of two; otherwise
    it carries ~1e-3 relative quantization (accumulation stays f32).
    """
    def block_avg(i0, i1, j0, j1):
        m = np.zeros((H, W), np.float32)
        m[i0:i1, j0:j1] = 1.0 / float((i1 - i0) * (j1 - j0))
        return m.reshape(H * W)

    cols = [block_avg(0, H, 0, W)]                                   # 1x1
    for a in range(2):                                               # 2x2 (row-major)
        for b in range(2):
            cols.append(block_avg(a * H // 2, (a + 1) * H // 2,
                                  b * W // 2, (b + 1) * W // 2))
    if M == '[1,2,4]':
        for i in range(4):                                           # 4x4 (row-major)
            for j in range(4):
                cols.append(block_avg(i * H // 4, (i + 1) * H // 4,
                                      j * W // 4, (j + 1) * W // 4))
    elif M != '[1,2]':
        raise NotImplementedError('ERROR M')

    F_ = len(cols)
    P = np.zeros((H * W, _FPAD), np.float32)
    P[:, :F_] = np.stack(cols, axis=1)
    return jnp.asarray(P, dtype=dtype), F_


def _spp_kernel(x_ref, p_ref, feat_ref):
    # x_ref   : (TBR, H*W)    row block of the spatially-flattened input (native dtype)
    # p_ref   : (H*W, 128)    constant pooling matrix (VMEM-resident, native dtype)
    # feat_ref: (TBR, 128)    lane-dense (padded) pyramid features (native dtype)
    feat_ref[...] = jnp.dot(
        x_ref[...], p_ref[...], preferred_element_type=jnp.float32
    ).astype(feat_ref.dtype)


def spp_forward(x, M='[1,2,4]'):
    """Returns (x_feature (N, C, F), x_strength (F, N)) matching the PyTorch SPP."""
    if M not in ('[1,2,4]', '[1,2]'):
        raise NotImplementedError('ERROR M')

    N, C, H, W = x.shape
    # The 2x2/1x1 pools are derived from the adaptive 4x4 pool in the reference module,
    # so exact equivalence requires H, W divisible by 4 (also for M='[1,2]').
    assert H % 4 == 0 and W % 4 == 0, "kernel assumes H, W divisible by 4"
    HW = H * W
    R = N * C

    P, F_ = _pooling_matrix(H, W, M, x.dtype)
    x_flat = x.reshape(R, HW)                       # free reshape, contiguous in HBM

    # ---- row-block (tile) size selection ------------------------------------------
    itemsize = x.dtype.itemsize
    row_mult = 16 if itemsize < 4 else 8            # packed sublanes for sub-32-bit dtypes
    hw_pad = ((HW + 127) // 128) * 128              # rows are lane-padded in VMEM/vregs
    bytes_per_row = hw_pad * itemsize + _FPAD * itemsize
    MAX_BLOCK_BYTES = 8 << 20                       # 8 MiB/block: amortizes ~0.35us/step;
                                                    # double-buffered it fits v7x 64 MiB VMEM
    tbr = (MAX_BLOCK_BYTES // bytes_per_row) // row_mult * row_mult
    tbr = max(row_mult, tbr)
    r_pad = ((R + row_mult - 1) // row_mult) * row_mult
    tbr = min(tbr, r_pad)
    # keep >= 4 grid steps when R permits: >=2 steps per v7x TensorCore + DMA/compute overlap
    MIN_STEPS = 4
    if r_pad // MIN_STEPS >= row_mult:
        tbr = min(tbr, (r_pad // MIN_STEPS) // row_mult * row_mult)
    grid = (pl.cdiv(R, tbr),)

    feat_padded = pl.pallas_call(
        _spp_kernel,
        grid=grid,
        in_specs=[
            pl.BlockSpec((tbr, HW), lambda r: (r, 0)),
            pl.BlockSpec((HW, _FPAD), lambda r: (0, 0)),   # constant -> stays in VMEM
        ],
        out_specs=pl.BlockSpec((tbr, _FPAD), lambda r: (r, 0)),
        out_shape=jax.ShapeDtypeStruct((R, _FPAD), x.dtype),
        compiler_params=pltpu.CompilerParams(
            dimension_semantics=("parallel",),
            vmem_limit_bytes=48 << 20,      # < 64 MiB physical on v7x; ample on v5e/v6e
        ),
    )(x_flat, P)

    fp = feat_padded.reshape(N, C, _FPAD)
    x_feature = fp[:, :, :F_]                                    # (N, C, F)
    # strength = mean over channels; done in f32 on the tiny padded array, then sliced,
    # so no extra full-array pass over the (R, 128) feature buffer is required.
    strength_padded = jnp.mean(fp.astype(jnp.float32), axis=1)   # (N, 128)
    x_strength = strength_padded[:, :F_].T.astype(x.dtype)       # (F, N)
    return x_feature, x_strength


def _reference(x, M='[1,2,4]'):
    # Pure-JAX reference (f32 math) for correctness checking.
    xf = x.astype(jnp.float32)
    N, C, H, W = x.shape
    x4 = xf.reshape(N, C, 4, H // 4, 4, W // 4).mean(axis=(3, 5))       # (N,C,4,4)
    x2 = x4.reshape(N, C, 2, 2, 2, 2).mean(axis=(3, 5))                 # (N,C,2,2)
    x1 = x4.mean(axis=(2, 3), keepdims=True)                            # (N,C,1,1)
    x4f = x4.reshape(N, C, 16)
    x2f = x2.reshape(N, C, 4)
    x1f = x1.reshape(N, C, 1)
    if M == '[1,2,4]':
        feat = jnp.concatenate([x1f, x2f, x4f], axis=2)
    elif M == '[1,2]':
        feat = jnp.concatenate([x1f, x2f], axis=2)
    else:
        raise NotImplementedError('ERROR M')
    strength = jnp.transpose(feat, (2, 0, 1)).mean(axis=2)
    return feat, strength


if __name__ == "__main__":
    key = jax.random.PRNGKey(0)
    N, C, H, W = 2, 4, 16, 16
    x = jax.random.normal(key, (N, C, H, W), dtype=jnp.float32)

    # M = '[1,2,4]', f32
    feat, strength = spp_forward(x, M='[1,2,4]')
    jax.block_until_ready((feat, strength))
    feat_ref, strength_ref = _reference(x, M='[1,2,4]')
    assert feat.shape == (N, C, 21) and strength.shape == (21, N)
    assert jnp.allclose(feat, feat_ref, atol=1e-5, rtol=1e-5)
    assert jnp.allclose(strength, strength_ref, atol=1e-5, rtol=1e-5)

    # M = '[1,2]', f32
    feat2, strength2 = spp_forward(x, M='[1,2]')
    jax.block_until_ready((feat2, strength2))
    feat2_ref, strength2_ref = _reference(x, M='[1,2]')
    assert feat2.shape == (N, C, 5) and strength2.shape == (5, N)
    assert jnp.allclose(feat2, feat2_ref, atol=1e-5, rtol=1e-5)
    assert jnp.allclose(strength2, strength2_ref, atol=1e-5, rtol=1e-5)

    # bf16 path (native-dtype MXU operands, f32 accumulation) — loose sanity check.
    xb = x.astype(jnp.bfloat16)
    featb, strengthb = spp_forward(xb, M='[1,2,4]')
    jax.block_until_ready((featb, strengthb))
    assert featb.dtype == jnp.bfloat16 and strengthb.dtype == jnp.bfloat16
    assert jnp.allclose(featb.astype(jnp.float32), feat_ref, atol=5e-2, rtol=5e-2)
    assert jnp.allclose(strengthb.astype(jnp.float32), strength_ref, atol=5e-2, rtol=5e-2)

    print("KERNEL_OK")
</pallas_src>

<mosaic_0001>
module attributes {stable_mosaic.version = 11 : i64} {
  func.func @_spp_kernel(%arg0: i32, %arg1: memref<8x256xf32, #tpu.memory_space<vmem>>, %arg2: memref<256x128xf32, #tpu.memory_space<vmem>>, %arg3: memref<8x128xf32, #tpu.memory_space<vmem>>) attributes {dimension_semantics = [#tpu.dimension_semantics<parallel>], iteration_bounds = array<i64: 1>, scalar_prefetch = 0 : i64, scratch_operands = 0 : i64, tpu.core_type = #tpu.core_type<tc>, window_params = [{transform_indices = @transform_0, window_bounds = array<i64: 8, 256>}, {pipeline_mode = #tpu.pipeline_mode<synchronous>, transform_indices = @transform_1, window_bounds = array<i64: 256, 128>}, {transform_indices = @transform_2, window_bounds = array<i64: 8, 128>}]} {
    %c0 = arith.constant 0 : index
    %c0_0 = arith.constant 0 : index
    %0 = vector.load %arg1[%c0, %c0_0] : memref<8x256xf32, #tpu.memory_space<vmem>>, vector<8x256xf32>
    %c0_1 = arith.constant 0 : index
    %c0_2 = arith.constant 0 : index
    %1 = vector.load %arg2[%c0_1, %c0_2] : memref<256x128xf32, #tpu.memory_space<vmem>>, vector<256x128xf32>
    %cst = arith.constant dense<0.000000e+00> : vector<8x128xf32>
    %2 = tpu.matmul %0, %1, %cst {dimension_numbers = #tpu.dot_dimension_numbers<[1], [0], [0], [1], [0, 0, 1, 1], [], []>} : vector<8x256xf32>, vector<256x128xf32>, vector<8x128xf32> -> vector<8x128xf32>
    %c0_3 = arith.constant 0 : index
    %c0_4 = arith.constant 0 : index
    %3 = vector.load %arg3[%c0_3, %c0_4] : memref<8x128xf32, #tpu.memory_space<vmem>>, vector<8x128xf32>
    tpu.vector_store %arg3[%c0_3, %c0_4], %2 {strides = array<i32>} : memref<8x128xf32, #tpu.memory_space<vmem>>, vector<8x128xf32>,
    return
  }
  func.func @transform_0(%arg0: i32) -> (i32, i32) {
    %c0_i32 = arith.constant 0 : i32
    %c0_i32_0 = arith.constant 0 : i32
    return %arg0, %c0_i32 : i32, i32
  }
  func.func @transform_1(%arg0: i32) -> (i32, i32) {
    %c0_i32 = arith.constant 0 : i32
    %c0_i32_0 = arith.constant 0 : i32
    %c0_i32_1 = arith.constant 0 : i32
    return %c0_i32, %c0_i32_0 : i32, i32
  }
  func.func @transform_2(%arg0: i32) -> (i32, i32) {
    %c0_i32 = arith.constant 0 : i32
    %c0_i32_0 = arith.constant 0 : i32
    return %arg0, %c0_i32 : i32, i32
  }
}

</mosaic_0001>

<llo_original>
// kernel: tpu_custom_call.1
$region0: #{tpu_custom_call.1}
  #allocation0 [shape = 'u32[]', space=smem, size = 0x4, offset = 0x4, fixed_abs, tag = 'smem constant byte address 0x4 - core index']
  #allocation1 [shape = 'u32[144,128]{1,0:T(1,128)}', space=vmem, size = 0x12000, scoped, tag = 'internal scratch']
  %s0 = inlined_call_operand.hbm [shape: f32[8,256], index: 0, kind: input, shape index: {}]
  %s1 = inlined_call_operand.hbm [shape: f32[256,128], index: 1, kind: input, shape index: {}]
  %s2 = inlined_call_operand.hbm [shape: f32[8,128], index: 2, kind: output, shape index: {}]
  %s3 = sld [smem:[#allocation0]]
  $region26: #{tpu_custom_call.1} parent=0
    _
  %s5 = ssub.s32 1, %s3
  %s6 = scalar_select 0, %s5, %s3
  $region1: #{tpu_custom_call.1} parent=0
    #allocation2 [shape = 'u8[8192]{0}', space=vmem, size = 0x2000, scoped, tag = 'input window, operand 0, single buffered']
    #allocation3 [shape = 's32[1]{0}', space=sflag, size = 0x4, scoped, tag = 'scoped memory for tpu_custom_call.1']
    #allocation4 [shape = 's32[1]{0}', space=sflag, size = 0x4, scoped, tag = 'scoped memory for tpu_custom_call.1']
    #allocation5 [shape = 'u8[131072]{0}', space=vmem, size = 0x20000, scoped, tag = 'input window, operand 1, single buffered']
    #allocation6 [shape = 's32[1]{0}', space=sflag, size = 0x4, scoped, tag = 'scoped memory for tpu_custom_call.1']
    #allocation7 [shape = 'u8[4096]{0}', space=vmem, size = 0x1000, scoped, tag = 'output window, operand 0, single buffered']
    %7 = vsyncpa [#allocation3], 0
    %8 = vsyncpa [#allocation6], 0
    %9 = vsyncpa [#allocation4], 0
    // Predicated region
    $region2: #{tpu_custom_call.1} parent=1 // pred_check
      _
    $region3: #{tpu_custom_call.1} parent=1 // pred_check_branch
      %11 = sbr.rel (0) target = $region5
    $region4: #{tpu_custom_call.1} parent=1 // pred_region
      %s13 = ssub.s32 256, 256
      %14 = vsyncadd [#allocation3], %s13
      %s16 = sshll.u32 [#allocation2], 4
      %s17 = int_to_ptr.vmem [resolvable:$true] %s16
      %19 = dma.hbm_to_vmem [thread:$0]  %s0, 256, %s17, [#allocation3]
    $region5: #{tpu_custom_call.1} parent=1 // pred_fallthru
      _
    // Predicated region
    $region6: #{tpu_custom_call.1} parent=1 // pred_check
      _
    $region7: #{tpu_custom_call.1} parent=1 // pred_check_branch
      %21 = sbr.rel (0) target = $region9
    $region8: #{tpu_custom_call.1} parent=1 // pred_region
      %s23 = ssub.s32 4096, 4096
      %24 = vsyncadd [#allocation6], %s23
      %s25 = sshll.u32 [#allocation5], 4
      %s26 = int_to_ptr.vmem [resolvable:$true] %s25
      %31 = dma.hbm_to_vmem [thread:$0]  %s1, 4096, %s26, [#allocation6], 128, 128, 8
    $region9: #{tpu_custom_call.1} parent=1 // pred_fallthru
      _
    // Predicated region
    $region10: #{tpu_custom_call.1} parent=1 // pred_check
      _
    $region11: #{tpu_custom_call.1} parent=1 // pred_check_branch
      %33 = sbr.rel (0) target = $region13
    $region12: #{tpu_custom_call.1} parent=1 // pred_region
      %34 = dma.done [#allocation3], 256
    $region13: #{tpu_custom_call.1} parent=1 // pred_fallthru
      _
    // Predicated region
    $region14: #{tpu_custom_call.1} parent=1 // pred_check
      _
    $region15: #{tpu_custom_call.1} parent=1 // pred_check_branch
      %36 = sbr.rel (0) target = $region17
    $region16: #{tpu_custom_call.1} parent=1 // pred_region
      %37 = dma.done [#allocation6], 4096
    $region17: #{tpu_custom_call.1} parent=1 // pred_fallthru
      _
    %v38 = vld [vmem:[#allocation2] sm:$0xff]
    %v39 = vld [vmem:[#allocation2 + $0x8] sm:$0xff]
    %v40 = vld [vmem:[#allocation5] sm:$0xff]
    %v41 = vld [vmem:[#allocation5 + $0x8] sm:$0xff]
    %v42 = vld [vmem:[#allocation5 + $0x10] sm:$0xff]
    %v43 = vld [vmem:[#allocation5 + $0x18] sm:$0xff]
    %v44 = vld [vmem:[#allocation5 + $0x20] sm:$0xff]
    %v45 = vld [vmem:[#allocation5 + $0x28] sm:$0xff]
    %v46 = vld [vmem:[#allocation5 + $0x30] sm:$0xff]
    %v47 = vld [vmem:[#allocation5 + $0x38] sm:$0xff]
    %v48 = vld [vmem:[#allocation5 + $0x40] sm:$0xff]
    %v49 = vld [vmem:[#allocation5 + $0x48] sm:$0xff]
    %v50 = vld [vmem:[#allocation5 + $0x50] sm:$0xff]
    %v51 = vld [vmem:[#allocation5 + $0x58] sm:$0xff]
    %v52 = vld [vmem:[#allocation5 + $0x60] sm:$0xff]
    %v53 = vld [vmem:[#allocation5 + $0x68] sm:$0xff]
    %v54 = vld [vmem:[#allocation5 + $0x70] sm:$0xff]
    %v55 = vld [vmem:[#allocation5 + $0x78] sm:$0xff]
    %v56 = vld [vmem:[#allocation5 + $0x80] sm:$0xff]
    %v57 = vld [vmem:[#allocation5 + $0x88] sm:$0xff]
    %v58 = vld [vmem:[#allocation5 + $0x90] sm:$0xff]
    %v59 = vld [vmem:[#allocation5 + $0x98] sm:$0xff]
    %v60 = vld [vmem:[#allocation5 + $0xa0] sm:$0xff]
    %v61 = vld [vmem:[#allocation5 + $0xa8] sm:$0xff]
    %v62 = vld [vmem:[#allocation5 + $0xb0] sm:$0xff]
    %v63 = vld [vmem:[#allocation5 + $0xb8] sm:$0xff]
    %v64 = vld [vmem:[#allocation5 + $0xc0] sm:$0xff]
    %v65 = vld [vmem:[#allocation5 + $0xc8] sm:$0xff]
    %v66 = vld [vmem:[#allocation5 + $0xd0] sm:$0xff]
    %v67 = vld [vmem:[#allocation5 + $0xd8] sm:$0xff]
    %v68 = vld [vmem:[#allocation5 + $0xe0] sm:$0xff]
    %v69 = vld [vmem:[#allocation5 + $0xe8] sm:$0xff]
    %v70 = vld [vmem:[#allocation5 + $0xf0] sm:$0xff]
    %v71 = vld [vmem:[#allocation5 + $0xf8] sm:$0xff]
    %72 = vmatprep.subr.mxu0 0.0
    %73 = vmatpush1.msra.mxu0 %v40
    %74 = vmatprep.subr.mxu0 0.0
    %75 = vmatpush1.msra.mxu0 %v41
    %76 = vmatprep.subr.mxu0 0.0
    %77 = vmatpush1.msra.mxu0 %v42
    %78 = vmatprep.subr.mxu0 0.0
    %79 = vmatpush1.msra.mxu0 %v43
    %80 = vmatprep.subr.mxu0 0.0
    %81 = vmatpush1.msra.mxu0 %v44
    %82 = vmatprep.subr.mxu0 0.0
    %83 = vmatpush1.msra.mxu0 %v45
    %84 = vmatprep.subr.mxu0 0.0
    %85 = vmatpush1.msra.mxu0 %v46
    %86 = vmatprep.subr.mxu0 0.0
    %87 = vmatpush1.msra.mxu0 %v47
    %88 = vmatprep.subr.mxu0 0.0
    %89 = vmatpush1.msra.mxu0 %v48
    %90 = vmatprep.subr.mxu0 0.0
    %91 = vmatpush1.msra.mxu0 %v49
    %92 = vmatprep.subr.mxu0 0.0
    %93 = vmatpush1.msra.mxu0 %v50
    %94 = vmatprep.subr.mxu0 0.0
    %95 = vmatpush1.msra.mxu0 %v51
    %96 = vmatprep.subr.mxu0 0.0
    %97 = vmatpush1.msra.mxu0 %v52
    %98 = vmatprep.subr.mxu0 0.0
    %99 = vmatpush1.msra.mxu0 %v53
    %100 = vmatprep.subr.mxu0 0.0
    %101 = vmatpush1.msra.mxu0 %v54
    %102 = vmatprep.subr.mxu0 0.0
    %103 = vmatpush1.msra.mxu0 %v55
    %104 = vmatprep.subr.mxu0 0.0
    %105 = vmatpush1.msra.mxu0 %v56
    %106 = vmatprep.subr.mxu0 0.0
    %107 = vmatpush1.msra.mxu0 %v57
    %108 = vmatprep.subr.mxu0 0.0
    %109 = vmatpush1.msra.mxu0 %v58
    %110 = vmatprep.subr.mxu0 0.0
    %111 = vmatpush1.msra.mxu0 %v59
    %112 = vmatprep.subr.mxu0 0.0
    %113 = vmatpush1.msra.mxu0 %v60
    %114 = vmatprep.subr.mxu0 0.0
    %115 = vmatpush1.msra.mxu0 %v61
    %116 = vmatprep.subr.mxu0 0.0
    %117 = vmatpush1.msra.mxu0 %v62
    %118 = vmatprep.subr.mxu0 0.0
    %119 = vmatpush1.msra.mxu0 %v63
    %120 = vmatprep.subr.mxu0 0.0
    %121 = vmatpush1.msra.mxu0 %v64
    %122 = vmatprep.subr.mxu0 0.0
    %123 = vmatpush1.msra.mxu0 %v65
    %124 = vmatprep.subr.mxu0 0.0
    %125 = vmatpush1.msra.mxu0 %v66
    %126 = vmatprep.subr.mxu0 0.0
    %127 = vmatpush1.msra.mxu0 %v67
    %128 = vmatprep.subr.mxu0 0.0
    %129 = vmatpush1.msra.mxu0 %v68
    %130 = vmatprep.subr.mxu0 0.0
    %131 = vmatpush1.msra.mxu0 %v69
    %132 = vmatprep.subr.mxu0 0.0
    %133 = vmatpush1.msra.mxu0 %v70
    %134 = vmatprep.subr.mxu0 0.0
    %135 = vmatpush1.msra.mxu0 %v71
    %136 = vmatprep.mubr.f32.mxu0 %v39
    %137 = vmatmul.mubr.f32.gmra.mrb[0].mxu0 %v38
    %v138 = vpop.f32.mrb[0].mxu0
    %v139 = vadd.f32 0.0, %v138
    %v140 = vpop.f32.mrb[0].mxu0
    %141 = vdwg.mxu0
    %142 = vst [vmem:[#allocation7] sm:$0xff] %v139
    // Predicated region
    $region18: #{tpu_custom_call.1} parent=1 // pred_check
      _
    $region19: #{tpu_custom_call.1} parent=1 // pred_check_branch
      %144 = sbr.rel (0) target = $region21
    $region20: #{tpu_custom_call.1} parent=1 // pred_region
      %s146 = ssub.s32 128, 128
      %147 = vsyncadd [#allocation4], %s146
      %s149 = sshll.u32 [#allocation7], 4
      %s150 = int_to_ptr.vmem [resolvable:$true] %s149
      %152 = dma.vmem_to_hbm [thread:$0]  %s150, 128, %s2, [#allocation4]
    $region21: #{tpu_custom_call.1} parent=1 // pred_fallthru
      _
    // Predicated region
    $region22: #{tpu_custom_call.1} parent=1 // pred_check
      _
    $region23: #{tpu_custom_call.1} parent=1 // pred_check_branch
      %154 = sbr.rel (0) target = $region25
    $region24: #{tpu_custom_call.1} parent=1 // pred_region
      %155 = dma.done [#allocation4], 128
    $region25: #{tpu_custom_call.1} parent=1 // pred_fallthru
      _
    %156 = vsyncpa [#allocation3], 1
    %157 = vsyncpa [#allocation6], 1
    %158 = vsyncpa [#allocation4], 1

</llo_original>
